<compile_context>
chip_gen: v7x
topology: tpu7x:2x2x1
jax: 0.10.0
libtpu: 0.0.40
codegen_flags: <defaults>
</compile_context>

<pallas_src>
import functools

import jax
import jax.numpy as jnp
from jax.experimental import pallas as pl
from jax.experimental.pallas import tpu as pltpu


# --------------------------------------------------------------------------
# tiling helpers
# --------------------------------------------------------------------------

_VMEM_LIMIT_BYTES = 40 * 1024 * 1024   # explicit scoped VMEM: safe on v5e/v6e (128 MiB) and v7x (64 MiB/TC)
_LN_BLOCK_BUDGET = 2 * 1024 * 1024     # per-stream block bytes (x + out streamed, plus f32 temps)
_ADD_BLOCK_BUDGET = 3 * 1024 * 1024    # per-stream block bytes (x, y, out streamed)
_LANE_CANDIDATES = (2048, 1024, 512, 256, 128)


def _round_up(n, m):
    return (n + m - 1) // m * m


def _sublane_multiple(itemsize):
    # f32 -> 8, bf16 -> 16, int8/fp8 -> 32 (sub-32-bit dtypes pack along sublanes)
    return max(8, 32 // int(itemsize))


def _pick_lane(n):
    """Largest lane-dense width (multiple of 128) dividing n, else None."""
    for lane in _LANE_CANDIDATES:
        if n % lane == 0:
            return lane
    return None


def _choose_row_tile(rows, row_bytes, block_budget_bytes, sublane):
    """Byte-budgeted row tile for a streaming (rows, lane)-shaped slab.

    Returns a tile that is either the full extent, an exact sublane-multiple divisor of
    `rows`, or a sublane-multiple size for which the caller pads the tail.
    """
    tr = block_budget_bytes // max(row_bytes, 1)
    tr = max(sublane, (tr // sublane) * sublane)
    # Keep >= 2 grid steps when the slab is large enough to matter (v7x: 2 TensorCores).
    if rows * row_bytes >= (1 << 20):
        half = max(sublane, _round_up((rows + 1) // 2, sublane))
        tr = min(tr, half)
    if tr >= rows:
        return rows                       # single full-extent block (always legal)
    # Prefer an exact divisor of rows so no tail padding is needed.
    t = tr
    while t >= sublane:
        if rows % t == 0:
            return t
        t -= sublane
    return tr                             # caller pads rows up to a multiple of tr


# --------------------------------------------------------------------------
# LayerNorm kernel (rows flattened: (B*S, D), D padded to a 128 multiple)
# --------------------------------------------------------------------------

def _layernorm_kernel(x_ref, g_ref, b_ref, o_ref, *, inv_d, eps):
    x = x_ref[...].astype(jnp.float32)                       # (tr, Dp)
    s1 = jnp.sum(x, axis=-1, keepdims=True)                  # one pass: sum
    s2 = jnp.sum(x * x, axis=-1, keepdims=True)              #           sum of squares
    mean = s1 * inv_d                                        # zero-padded lanes contribute 0
    var = jnp.maximum(s2 * inv_d - mean * mean, 0.0)
    inv = jax.lax.rsqrt(var + eps)                           # EUP rsqrt, not a VALU divide
    y = (x - mean) * inv * g_ref[...] + b_ref[...]           # (1, Dp) scale/shift broadcast
    o_ref[...] = y.astype(o_ref.dtype)


def layernorm(x, gamma, beta, *, eps=1e-5):
    B, S, D = x.shape
    rows = B * S
    itemsize = x.dtype.itemsize
    sublane = _sublane_multiple(itemsize)

    dp = _round_up(D, 128)                # lane-dense blocks (avoid masked vst.msk stores)
    tr = _choose_row_tile(rows, dp * itemsize, _LN_BLOCK_BUDGET, sublane)
    rows_p = _round_up(rows, tr)

    xf = x.reshape(rows, D)
    if dp != D or rows_p != rows:
        xf = jnp.pad(xf, ((0, rows_p - rows), (0, dp - D)))
    g2 = jnp.pad(gamma.astype(jnp.float32), (0, dp - D)).reshape(1, dp)
    b2 = jnp.pad(beta.astype(jnp.float32), (0, dp - D)).reshape(1, dp)

    out = pl.pallas_call(
        functools.partial(_layernorm_kernel, inv_d=1.0 / D, eps=float(eps)),
        out_shape=jax.ShapeDtypeStruct((rows_p, dp), x.dtype),
        grid=(rows_p // tr,),
        in_specs=[pl.BlockSpec((tr, dp), lambda i: (i, 0)),
                  pl.BlockSpec((1, dp), lambda i: (0, 0)),
                  pl.BlockSpec((1, dp), lambda i: (0, 0))],
        out_specs=pl.BlockSpec((tr, dp), lambda i: (i, 0)),
        compiler_params=pltpu.CompilerParams(
            dimension_semantics=("parallel",),
            vmem_limit_bytes=_VMEM_LIMIT_BYTES),
    )(xf, g2, b2)

    if dp != D or rows_p != rows:
        out = out[:rows, :D]
    return out.reshape(B, S, D)


# --------------------------------------------------------------------------
# Residual add kernel (lane-dense flattened slab)
# --------------------------------------------------------------------------

def _add_kernel(x_ref, y_ref, o_ref):
    o_ref[...] = (x_ref[...] + y_ref[...]).astype(o_ref.dtype)


def residual_add(x, y):
    """out = x + y, as a lane-dense flattened streaming add."""
    assert x.shape == y.shape and x.dtype == y.dtype
    shape = x.shape
    n = x.size
    itemsize = x.dtype.itemsize
    sublane = _sublane_multiple(itemsize)

    xf = x.reshape(-1)
    yf = y.reshape(-1)
    lane = _pick_lane(n)
    n_pad = n
    if lane is None:                      # non-128-multiple element count: pad flat arrays
        n_pad = _round_up(n, 128)
        xf = jnp.pad(xf, (0, n_pad - n))
        yf = jnp.pad(yf, (0, n_pad - n))
        lane = _pick_lane(n_pad)

    rows = n_pad // lane
    tr = _choose_row_tile(rows, lane * itemsize, _ADD_BLOCK_BUDGET, sublane)
    rows_p = _round_up(rows, tr)

    x2 = xf.reshape(rows, lane)
    y2 = yf.reshape(rows, lane)
    if rows_p != rows:
        x2 = jnp.pad(x2, ((0, rows_p - rows), (0, 0)))
        y2 = jnp.pad(y2, ((0, rows_p - rows), (0, 0)))

    out = pl.pallas_call(
        _add_kernel,
        out_shape=jax.ShapeDtypeStruct((rows_p, lane), x.dtype),
        grid=(rows_p // tr,),
        in_specs=[pl.BlockSpec((tr, lane), lambda i: (i, 0)),
                  pl.BlockSpec((tr, lane), lambda i: (i, 0))],
        out_specs=pl.BlockSpec((tr, lane), lambda i: (i, 0)),
        input_output_aliases={1: 0},      # reuse the sublayer-output buffer for the result
        compiler_params=pltpu.CompilerParams(
            dimension_semantics=("parallel",),
            vmem_limit_bytes=_VMEM_LIMIT_BYTES),
    )(x2, y2)

    out = out.reshape(-1)
    if n_pad != n:
        out = out[:n]
    return out.reshape(shape)


def pooled_residual_add(x, y, *, stride):
    """out = MaxPool1d(kernel_size=1, stride)(x over seq) + y   (stride != 1 path)."""
    B, S, D = x.shape
    s_out = (S - 1) // stride + 1
    assert y.shape == (B, s_out, D), "sublayer output length must match pooled length"
    # MaxPool1d(kernel=1, stride) over the sequence axis is a strided row subsample.
    # Slice in the wrapper so only the needed rows cross HBM->VMEM inside the kernel,
    # then reuse the lane-dense flattened add kernel (tiled, VMEM-bounded, pipelined).
    res = x[:, ::stride, :]
    return residual_add(res, y)


# --------------------------------------------------------------------------
# SublayerConnection forward (eval mode)
# --------------------------------------------------------------------------

def sublayer_connection(x, sublayer, gamma, beta, *, eps=1e-5, i=-1, stride_num=None):
    """Mirrors SublayerConnection.forward (eval mode: dropout = identity).

    `sublayer` is an arbitrary JAX callable (the caller-supplied nn.Module in PyTorch)
    applied to the LayerNorm output between the two Pallas kernels.
    `stride_num[i]` must be a static Python int at trace time.
    """
    normed = layernorm(x, gamma, beta, eps=eps)
    y = sublayer(normed)  # TODO(synk): arbitrary sublayer cannot be fused into the kernel.
    stride = 1
    if i != -1 and stride_num is not None:
        stride = int(stride_num[i])
    if stride == 1:
        return residual_add(x, y)
    return pooled_residual_add(x, y, stride=stride)


# --------------------------------------------------------------------------
# Pure-JAX reference mirroring the PyTorch forward (eval mode)
# --------------------------------------------------------------------------

def _reference_sublayer_connection(x, sublayer, gamma, beta, *, eps=1e-5, i=-1,
                                   stride_num=None):
    mean = jnp.mean(x, axis=-1, keepdims=True)
    var = jnp.mean((x - mean) ** 2, axis=-1, keepdims=True)
    normed = (x - mean) / jnp.sqrt(var + eps) * gamma + beta
    y = sublayer(normed)
    if i != -1 and stride_num is not None and int(stride_num[i]) != 1:
        stride = int(stride_num[i])
        res = x[:, ::stride, :]   # MaxPool1d(kernel_size=1, stride) == strided subsample
        return res + y
    return x + y


# --------------------------------------------------------------------------
# demo / self-test
# --------------------------------------------------------------------------

if __name__ == "__main__":
    B, S, D = 2, 8, 32
    stride_num = [2, 1]

    key0 = jax.random.PRNGKey(0)
    keys = jax.random.split(key0, 8)

    x = jax.random.normal(keys[0], (B, S, D), jnp.float32)
    gamma = jax.random.uniform(keys[1], (D,), jnp.float32, 0.5, 1.5)
    beta = jax.random.uniform(keys[2], (D,), jnp.float32, -0.5, 0.5)

    # simple deterministic sublayers (stand-ins for the attention / FFN sublayer)
    w1 = jax.random.normal(keys[3], (D, D), jnp.float32) * 0.1
    b1 = jax.random.normal(keys[4], (D,), jnp.float32) * 0.1
    w2 = jax.random.normal(keys[5], (D, D), jnp.float32) * 0.1
    b2 = jax.random.normal(keys[6], (D,), jnp.float32) * 0.1

    sub_plain = lambda t: t @ w1 + b1                              # keeps sequence length
    sub_strided = lambda t: (t @ w2 + b2)[:, ::stride_num[0], :]   # halves sequence length

    # path 1: i == -1 (plain residual)
    out_a = jax.block_until_ready(sublayer_connection(x, sub_plain, gamma, beta))
    ref_a = _reference_sublayer_connection(x, sub_plain, gamma, beta)
    assert out_a.shape == (B, S, D)
    assert jnp.allclose(out_a, ref_a, atol=1e-4, rtol=1e-4), "mismatch (plain path)"

    # path 2: i == 1, stride_num[1] == 1 (plain residual via stride table)
    out_b = jax.block_until_ready(
        sublayer_connection(x, sub_plain, gamma, beta, i=1, stride_num=stride_num))
    ref_b = _reference_sublayer_connection(x, sub_plain, gamma, beta, i=1,
                                           stride_num=stride_num)
    assert jnp.allclose(out_b, ref_b, atol=1e-4, rtol=1e-4), "mismatch (stride==1 path)"

    # path 3: i == 0, stride_num[0] == 2 (pooled residual)
    out_c = jax.block_until_ready(
        sublayer_connection(x, sub_strided, gamma, beta, i=0, stride_num=stride_num))
    ref_c = _reference_sublayer_connection(x, sub_strided, gamma, beta, i=0,
                                           stride_num=stride_num)
    assert out_c.shape == (B, S // stride_num[0], D)
    assert jnp.allclose(out_c, ref_c, atol=1e-4, rtol=1e-4), "mismatch (pooled path)"

    print("KERNEL_OK")
</pallas_src>

<mosaic_0001>
module attributes {stable_mosaic.version = 11 : i64} {
  func.func @_layernorm_kernel(%arg0: i32, %arg1: memref<16x128xf32, #tpu.memory_space<vmem>>, %arg2: memref<1x128xf32, #tpu.memory_space<vmem>>, %arg3: memref<1x128xf32, #tpu.memory_space<vmem>>, %arg4: memref<16x128xf32, #tpu.memory_space<vmem>>) attributes {dimension_semantics = [#tpu.dimension_semantics<parallel>], iteration_bounds = array<i64: 1>, scalar_prefetch = 0 : i64, scratch_operands = 0 : i64, tpu.core_type = #tpu.core_type<tc>, window_params = [{transform_indices = @transform_0, window_bounds = array<i64: 16, 128>}, {pipeline_mode = #tpu.pipeline_mode<synchronous>, transform_indices = @transform_1, window_bounds = array<i64: 1, 128>}, {pipeline_mode = #tpu.pipeline_mode<synchronous>, transform_indices = @transform_2, window_bounds = array<i64: 1, 128>}, {transform_indices = @transform_3, window_bounds = array<i64: 16, 128>}]} {
    %c0 = arith.constant 0 : index
    %c0_0 = arith.constant 0 : index
    %0 = vector.load %arg1[%c0, %c0_0] : memref<16x128xf32, #tpu.memory_space<vmem>>, vector<16x128xf32>
    %cst = arith.constant dense<0.000000e+00> : vector<16xf32>
    %1 = vector.multi_reduction <add>, %0, %cst [1] : vector<16x128xf32> to vector<16xf32>
    %2 = vector.shape_cast %1 : vector<16xf32> to vector<16x1xf32>
    %3 = arith.mulf %0, %0 : vector<16x128xf32>
    %cst_1 = arith.constant dense<0.000000e+00> : vector<16xf32>
    %4 = vector.multi_reduction <add>, %3, %cst_1 [1] : vector<16x128xf32> to vector<16xf32>
    %5 = vector.shape_cast %4 : vector<16xf32> to vector<16x1xf32>
    %cst_2 = arith.constant 3.125000e-02 : f32
    %6 = vector.broadcast %cst_2 : f32 to vector<16x1xf32>
    %7 = arith.mulf %2, %6 : vector<16x1xf32>
    %cst_3 = arith.constant 3.125000e-02 : f32
    %8 = vector.broadcast %cst_3 : f32 to vector<16x1xf32>
    %9 = arith.mulf %5, %8 : vector<16x1xf32>
    %10 = arith.mulf %7, %7 : vector<16x1xf32>
    %11 = arith.subf %9, %10 : vector<16x1xf32>
    %cst_4 = arith.constant 0.000000e+00 : f32
    %12 = vector.broadcast %cst_4 : f32 to vector<16x1xf32>
    %13 = arith.maximumf %11, %12 : vector<16x1xf32>
    %cst_5 = arith.constant 9.99999974E-6 : f32
    %14 = vector.broadcast %cst_5 : f32 to vector<16x1xf32>
    %15 = arith.addf %13, %14 : vector<16x1xf32>
    %16 = math.rsqrt %15 : vector<16x1xf32>
    %17 = vector.broadcast %7 : vector<16x1xf32> to vector<16x128xf32>
    %18 = arith.subf %0, %17 : vector<16x128xf32>
    %19 = vector.broadcast %16 : vector<16x1xf32> to vector<16x128xf32>
    %20 = arith.mulf %18, %19 : vector<16x128xf32>
    %c0_6 = arith.constant 0 : index
    %c0_7 = arith.constant 0 : index
    %21 = vector.load %arg2[%c0_6, %c0_7] : memref<1x128xf32, #tpu.memory_space<vmem>>, vector<1x128xf32>
    %22 = vector.broadcast %21 : vector<1x128xf32> to vector<16x128xf32>
    %23 = arith.mulf %20, %22 : vector<16x128xf32>
    %c0_8 = arith.constant 0 : index
    %c0_9 = arith.constant 0 : index
    %24 = vector.load %arg3[%c0_8, %c0_9] : memref<1x128xf32, #tpu.memory_space<vmem>>, vector<1x128xf32>
    %25 = vector.broadcast %24 : vector<1x128xf32> to vector<16x128xf32>
    %26 = arith.addf %23, %25 : vector<16x128xf32>
    %c0_10 = arith.constant 0 : index
    %c0_11 = arith.constant 0 : index
    %27 = vector.load %arg4[%c0_10, %c0_11] : memref<16x128xf32, #tpu.memory_space<vmem>>, vector<16x128xf32>
    tpu.vector_store %arg4[%c0_10, %c0_11], %26 {strides = array<i32>} : memref<16x128xf32, #tpu.memory_space<vmem>>, vector<16x128xf32>,
    return
  }
  func.func @transform_0(%arg0: i32) -> (i32, i32) {
    %c0_i32 = arith.constant 0 : i32
    %c0_i32_0 = arith.constant 0 : i32
    return %arg0, %c0_i32 : i32, i32
  }
  func.func @transform_1(%arg0: i32) -> (i32, i32) {
    %c0_i32 = arith.constant 0 : i32
    %c0_i32_0 = arith.constant 0 : i32
    %c0_i32_1 = arith.constant 0 : i32
    return %c0_i32, %c0_i32_0 : i32, i32
  }
  func.func @transform_2(%arg0: i32) -> (i32, i32) {
    %c0_i32 = arith.constant 0 : i32
    %c0_i32_0 = arith.constant 0 : i32
    %c0_i32_1 = arith.constant 0 : i32
    return %c0_i32, %c0_i32_0 : i32, i32
  }
  func.func @transform_3(%arg0: i32) -> (i32, i32) {
    %c0_i32 = arith.constant 0 : i32
    %c0_i32_0 = arith.constant 0 : i32
    return %arg0, %c0_i32 : i32, i32
  }
}

</mosaic_0001>

<llo_original>
// kernel: tpu_custom_call.1
$region0: #{tpu_custom_call.1}
  #allocation0 [shape = 'u32[]', space=smem, size = 0x4, offset = 0x4, fixed_abs, tag = 'smem constant byte address 0x4 - core index']
  #allocation1 [shape = 'u32[144,128]{1,0:T(1,128)}', space=vmem, size = 0x12000, scoped, tag = 'internal scratch']
  %s0 = inlined_call_operand.hbm [shape: f32[16,128], index: 0, kind: input, shape index: {}]
  %s1 = inlined_call_operand.vmem [shape: f32[1,128], index: 1, kind: input, shape index: {}]
  %s2 = inlined_call_operand.vmem [shape: f32[1,128], index: 2, kind: input, shape index: {}]
  %s3 = inlined_call_operand.hbm [shape: f32[16,128], index: 3, kind: output, shape index: {}]
  %s4 = sld [smem:[#allocation0]]
  $region26: #{tpu_custom_call.1} parent=0
    _
  %s6 = ssub.s32 1, %s4
  %s7 = scalar_select 0, %s6, %s4
  $region1: #{tpu_custom_call.1} parent=0
    #allocation2 [shape = 'u8[8192]{0}', space=vmem, size = 0x2000, scoped, tag = 'input window, operand 0, single buffered']
    #allocation3 [shape = 's32[1]{0}', space=sflag, size = 0x4, scoped, tag = 'scoped memory for tpu_custom_call.1']
    #allocation4 [shape = 's32[1]{0}', space=sflag, size = 0x4, scoped, tag = 'scoped memory for tpu_custom_call.1']
    #allocation5 [shape = 'u8[8192]{0}', space=vmem, size = 0x2000, scoped, tag = 'output window, operand 0, single buffered']
    %8 = vsyncpa [#allocation3], 0
    %9 = vsyncpa [#allocation4], 0
    // Predicated region
    $region2: #{tpu_custom_call.1} parent=1 // pred_check
      _
    $region3: #{tpu_custom_call.1} parent=1 // pred_check_branch
      %11 = sbr.rel (0) target = $region5
    $region4: #{tpu_custom_call.1} parent=1 // pred_region
      %s13 = ssub.s32 256, 256
      %14 = vsyncadd [#allocation3], %s13
      %s15 = sshll.u32 [#allocation2], 4
      %s16 = int_to_ptr.vmem [resolvable:$true] %s15
      %21 = dma.hbm_to_vmem [thread:$0]  %s0, 256, %s16, [#allocation3], 128, 128, 8
    $region5: #{tpu_custom_call.1} parent=1 // pred_fallthru
      _
    // Predicated region
    $region6: #{tpu_custom_call.1} parent=1 // pred_check
      _
    $region7: #{tpu_custom_call.1} parent=1 // pred_check_branch
      %23 = sbr.rel (0) target = $region9
    $region8: #{tpu_custom_call.1} parent=1 // pred_region
      _
    $region9: #{tpu_custom_call.1} parent=1 // pred_fallthru
      _
    // Predicated region
    $region10: #{tpu_custom_call.1} parent=1 // pred_check
      _
    $region11: #{tpu_custom_call.1} parent=1 // pred_check_branch
      %25 = sbr.rel (0) target = $region13
    $region12: #{tpu_custom_call.1} parent=1 // pred_region
      _
    $region13: #{tpu_custom_call.1} parent=1 // pred_fallthru
      _
    // Predicated region
    $region14: #{tpu_custom_call.1} parent=1 // pred_check
      _
    $region15: #{tpu_custom_call.1} parent=1 // pred_check_branch
      %27 = sbr.rel (0) target = $region17
    $region16: #{tpu_custom_call.1} parent=1 // pred_region
      %28 = dma.done [#allocation3], 256
    $region17: #{tpu_custom_call.1} parent=1 // pred_fallthru
      _
    %v29 = vld [vmem:[#allocation2] sm:$0xff]
    %v30 = vld [vmem:[#allocation2 + $0x8] sm:$0xff]
    %31 = vadd.xlane.f32.xlu0 %v29
    %v32 = vpop.xlane.xlu0 %31
    %33 = vadd.xlane.f32.xlu0 %v30
    %v34 = vpop.xlane.xlu0 %33
    %v35 = vmul.f32 %v29, %v29
    %v36 = vmul.f32 %v30, %v30
    %37 = vadd.xlane.f32.xlu0 %v35
    %v38 = vpop.xlane.xlu0 %37
    %39 = vadd.xlane.f32.xlu0 %v36
    %v40 = vpop.xlane.xlu0 %39
    %v41 = vmul.f32 %v32, 0.03125
    %v42 = vmul.f32 %v34, 0.03125
    %v43 = vmul.f32 %v38, 0.03125
    %v44 = vmul.f32 %v40, 0.03125
    %v45 = vmul.f32 %v41, %v41
    %v46 = vmul.f32 %v42, %v42
    %v47 = vsub.f32 %v43, %v45
    %v48 = vsub.f32 %v44, %v46
    %v49 = vmax.f32 %v47, 0.0
    %v50 = vmax.f32 %v48, 0.0
    %v51 = vadd.f32 %v49, 1e-05
    %v52 = vadd.f32 %v50, 1e-05
    %v53 = vrsqrt.pop %v51
    %v54 = vrsqrt.pop %v52
    %v55 = vsub.f32 %v29, %v41
    %v56 = vsub.f32 %v30, %v42
    %v57 = vmul.f32 %v55, %v53
    %v58 = vmul.f32 %v56, %v54
    %v59 = vld [vmem:[%s1] sm:$0x1]
    %v61 = vlaneseq
    %v62 = vshrl.u32 %v61, 7
    %v63 = vsub.s32 0, %v62
    %v64 = vrot.slane %v59, %v63
    %v66 = vmul.f32 %v57, %v64
    %v67 = vmul.f32 %v58, %v64
    %v68 = vld [vmem:[%s2] sm:$0x1]
    %v70 = vlaneseq
    %v71 = vshrl.u32 %v70, 7
    %v72 = vsub.s32 0, %v71
    %v73 = vrot.slane %v68, %v72
    %v75 = vadd.f32 %v66, %v73
    %v76 = vadd.f32 %v67, %v73
    %77 = vst [vmem:[#allocation5] sm:$0xff] %v75
    %78 = vst [vmem:[#allocation5 + $0x8] sm:$0xff] %v76
    // Predicated region
    $region18: #{tpu_custom_call.1} parent=1 // pred_check
      _
    $region19: #{tpu_custom_call.1} parent=1 // pred_check_branch
      %80 = sbr.rel (0) target = $region21
    $region20: #{tpu_custom_call.1} parent=1 // pred_region
      %s82 = ssub.s32 256, 256
      %83 = vsyncadd [#allocation4], %s82
      %s84 = sshll.u32 [#allocation5], 4
      %s85 = int_to_ptr.vmem [resolvable:$true] %s84
      %90 = dma.vmem_to_hbm [thread:$0]  %s85, 256, %s3, [#allocation4], 128, 128, 8
    $region21: #{tpu_custom_call.1} parent=1 // pred_fallthru
      _
    // Predicated region
    $region22: #{tpu_custom_call.1} parent=1 // pred_check
      _
    $region23: #{tpu_custom_call.1} parent=1 // pred_check_branch
      %92 = sbr.rel (0) target = $region25
    $region24: #{tpu_custom_call.1} parent=1 // pred_region
      %93 = dma.done [#allocation4], 256
    $region25: #{tpu_custom_call.1} parent=1 // pred_fallthru
      _
    %94 = vsyncpa [#allocation3], 1
    %95 = vsyncpa [#allocation4], 1

</llo_original>
